<compile_context>
chip_gen: v7x
topology: tpu7x:2x2x1
jax: 0.10.0
libtpu: 0.0.40
codegen_flags: <defaults>
</compile_context>

<pallas_src>
import functools

import jax
import jax.numpy as jnp
from jax import lax
from jax.experimental import pallas as pl
from jax.experimental.pallas import tpu as pltpu

KERNEL_SIZES = (6, 12, 24, 48)
K_MAX = max(KERNEL_SIZES)   # unified tap count (48); smaller kernels zero-padded into it
P_MAX = K_MAX // 2          # unified halo (24)
BN_EPS = 1e-5
LANE = 128


def _round_up(x, m):
    return (x + m - 1) // m * m


def _msconv_kernel(x_ref, w_ref, b_ref, o_ref, xp_ref, patch_ref, *,
                   c_in, l, nb, l_pad, g, k_max, p_max):
    """Fused 4-scale Conv1d + BN + ReLU for `nb` batch elements.

    x_ref    : (nb, C_in, L)           input block (matmul dtype)
    w_ref    : (S*C_out, K*C_in)       BN-folded, tap-flattened, scale-fused weights
    b_ref    : (S*C_out, 1)            BN-folded bias (f32)
    o_ref    : (nb, S*C_out, L_pad)    lane-dense output block (torch.cat(dim=1) order)
    xp_ref   : (g*C_in, nb*L_pad + K)  halo-padded input replicated at g tap-shifts
    patch_ref: (K*C_in, nb*L_pad)      im2col slab (matmul dtype)
    """
    xcols = nb * l_pad + k_max
    in_dtype = xp_ref.dtype

    # Build the shift-replicated, zero-haloed input.  Row block p holds the padded
    # signal advanced by p taps, so a group of g consecutive taps becomes a single
    # full-sublane-tile, full-lane-width copy in the im2col loop below.
    # Zero only the strips around each batch element's window; the windows are
    # fully overwritten each step.  (Strips are re-zeroed every step instead of
    # once at program_id==0 because scratch is per-core under "parallel" megacore
    # partitioning; the memset is ~1/K of the im2col store traffic.)
    for p in range(g):
        rows = slice(p * c_in, (p + 1) * c_in)
        head = p_max - p
        if head > 0:
            xp_ref[rows, 0:head] = jnp.zeros((c_in, head), in_dtype)
        for b in range(nb):
            start = b * l_pad + p_max - p
            xp_ref[rows, start:start + l] = x_ref[b]          # dtype already matches
            nxt = (b + 1) * l_pad + p_max - p if b + 1 < nb else xcols
            gap = nxt - (start + l)
            if gap > 0:
                xp_ref[rows, start + l:nxt] = jnp.zeros((c_in, gap), in_dtype)

    # im2col: one contiguous (g*C_in, nb*L_pad) copy per tap group; the whole
    # 4-scale conv then collapses into a single MXU matmul of contraction depth
    # K*C_in over an NB*L_pad wide N dim.
    # TODO(synk): for realistically large C_in (>= ~64) skip the im2col and
    # accumulate K shifted matmuls directly off xp_ref (avoids the 48x store
    # expansion and the (K*C_in, NB*L_pad) scratch under v7x's 64 MiB VMEM).
    for s in range(k_max // g):
        patch_ref[s * g * c_in:(s + 1) * g * c_in, :] = \
            xp_ref[:, s * g:s * g + nb * l_pad]

    acc = jnp.dot(w_ref[...], patch_ref[...], preferred_element_type=jnp.float32)
    # Fused BN bias + ReLU epilogue in f32 (Dropout is identity in eval mode;
    # f32 epilogue is also correct for v5e, which has no bf16 VPU).
    res = jnp.maximum(acc + b_ref[...], 0.0)
    for b in range(nb):
        o_ref[b] = res[:, b * l_pad:(b + 1) * l_pad].astype(o_ref.dtype)


def multi_scale_forward(x, w_fused, b_fused, *, matmul_dtype=jnp.float32,
                        out_dtype=jnp.float32, block_batch=None):
    """x: (N, C_in, L) f32; w_fused: (S*C_out, K_MAX*C_in); b_fused: (S*C_out, 1).

    Returns (N, S*C_out, L+1) == torch.cat([block(x) for block in blocks], dim=1).
    """
    assert all(k % 2 == 0 for k in KERNEL_SIZES), "even kernel sizes required"
    n, c_in, l = x.shape
    c_tot, kc = w_fused.shape
    assert kc == K_MAX * c_in, (kc, K_MAX * c_in)
    l_out = l + 1
    # Lane-dense per-element output stride; also >= L + P_MAX so the shifted im2col
    # reads of element b never reach element b+1's data (halo between them stays 0).
    l_pad = _round_up(max(l_out, l + P_MAX), LANE)

    elt = jnp.dtype(matmul_dtype).itemsize
    # Taps per im2col copy so each store fills a complete sublane tile
    # (8 rows for 32-bit, 16 rows for 16-bit scratch).
    pack = (8 * 4) // elt
    if c_in <= pack and pack % c_in == 0 and K_MAX % (pack // c_in) == 0:
        g = pack // c_in
    else:
        g = 1

    # Batch elements per grid step: grow the MXU N dim and amortize per-step
    # overhead, capped so the im2col slab stays a small slice of VMEM.
    if block_batch is None:
        per_elem = K_MAX * c_in * l_pad * elt
        block_batch = max(1, min(8, (8 << 20) // max(per_elem, 1)))
    nb = int(min(n, block_batch))

    n_pad = _round_up(n, nb)
    x_in = x.astype(matmul_dtype)              # bf16 inputs halve HBM/VMEM traffic
    if n_pad != n:
        x_in = jnp.pad(x_in, ((0, n_pad - n), (0, 0), (0, 0)))
    w_in = w_fused.astype(matmul_dtype)
    b_in = b_fused.astype(jnp.float32)

    xcols = nb * l_pad + K_MAX
    out_elt = jnp.dtype(out_dtype).itemsize
    vmem_est = (2 * nb * c_in * l * elt                 # double-buffered input blocks
                + 2 * nb * c_tot * l_pad * out_elt      # double-buffered output blocks
                + c_tot * kc * elt + c_tot * 4          # resident weights + bias
                + g * c_in * xcols * elt                # halo/shift scratch
                + K_MAX * c_in * nb * l_pad * elt)      # im2col scratch
    vmem_limit = int(min(max(2 * vmem_est, 16 << 20), 48 << 20))  # v7x-safe cap

    kern = functools.partial(_msconv_kernel, c_in=c_in, l=l, nb=nb, l_pad=l_pad,
                             g=g, k_max=K_MAX, p_max=P_MAX)
    out = pl.pallas_call(
        kern,
        out_shape=jax.ShapeDtypeStruct((n_pad, c_tot, l_pad), out_dtype),
        grid=(n_pad // nb,),
        in_specs=[
            pl.BlockSpec((nb, c_in, l), lambda i: (i, 0, 0)),
            # Fused weights / bias are grid-invariant -> fetched once, VMEM-resident.
            pl.BlockSpec((c_tot, kc), lambda i: (0, 0)),
            pl.BlockSpec((c_tot, 1), lambda i: (0, 0)),
        ],
        out_specs=pl.BlockSpec((nb, c_tot, l_pad), lambda i: (i, 0, 0)),
        scratch_shapes=[
            pltpu.VMEM((g * c_in, xcols), matmul_dtype),
            pltpu.VMEM((K_MAX * c_in, nb * l_pad), matmul_dtype),
        ],
        compiler_params=pltpu.CompilerParams(
            dimension_semantics=("parallel",),       # batch tiles feed both v7x TCs
            vmem_limit_bytes=vmem_limit),
    )(x_in, w_in, b_in)
    # Layout plumbing only: drop batch padding and the lane padding of L_out.
    return out[:n, :, :l_out]


def make_params(key, c_in, c_out):
    """Deterministic synthetic parameters for the 4 Conv1DBlocks."""
    params = []
    for k_size in KERNEL_SIZES:
        key, kw, kb, kg, kbe, km, kv = jax.random.split(key, 7)
        w = jax.random.normal(kw, (c_out, c_in, k_size), jnp.float32) * 0.1
        b = jax.random.normal(kb, (c_out,), jnp.float32) * 0.1
        gamma = jax.random.uniform(kg, (c_out,), jnp.float32, 0.5, 1.5)
        beta = jax.random.normal(kbe, (c_out,), jnp.float32) * 0.1
        mean = jax.random.normal(km, (c_out,), jnp.float32) * 0.1
        var = jax.random.uniform(kv, (c_out,), jnp.float32, 0.5, 1.5)
        params.append((w, b, gamma, beta, mean, var, k_size))
    return params


def fold_params(params, c_in, c_out):
    """Fold BN (eval mode) into conv weights, unify taps to K_MAX, fuse the 4 scales.

    Returns w_fused (S*C_out, K_MAX*C_in) with column order (tap, in_channel)
    matching the kernel's im2col rows, and b_fused (S*C_out, 1).
    """
    w_all, b_all = [], []
    for (w, b, gamma, beta, mean, var, k_size) in params:
        scale = gamma / jnp.sqrt(var + BN_EPS)                 # (C_out,)
        w_f = w * scale[:, None, None]                         # (C_out, C_in, k)
        b_f = (b - mean) * scale + beta                        # (C_out,)
        off = P_MAX - k_size // 2                              # align taps in K_MAX grid
        w_pad = jnp.zeros((c_out, c_in, K_MAX), jnp.float32)
        w_pad = w_pad.at[:, :, off:off + k_size].set(w_f)
        # (C_out, C_in, K) -> (C_out, K, C_in) -> (C_out, K*C_in): column t*C_in + c
        w_all.append(jnp.transpose(w_pad, (0, 2, 1)).reshape(c_out, K_MAX * c_in))
        b_all.append(b_f)
    # Concatenating scales along output channels reproduces torch.cat(outputs, dim=1).
    return jnp.concatenate(w_all, axis=0), jnp.concatenate(b_all)[:, None]


def reference_forward(x, params):
    """Pure-JAX reference of the PyTorch forward (eval mode)."""
    outs = []
    for (w, b, gamma, beta, mean, var, k_size) in params:
        p = k_size // 2
        y = lax.conv_general_dilated(
            x, w, window_strides=(1,), padding=[(p, p)],
            dimension_numbers=("NCH", "OIH", "NCH"))
        y = y + b[None, :, None]
        y = (y - mean[None, :, None]) / jnp.sqrt(var[None, :, None] + BN_EPS)
        y = y * gamma[None, :, None] + beta[None, :, None]
        y = jnp.maximum(y, 0.0)        # ReLU; Dropout is identity in eval mode
        outs.append(y)
    return jnp.concatenate(outs, axis=1)


if __name__ == "__main__":
    # Small shapes consistent with the module: N=2, C_in=4, C_out=8, L=16, stride=1.
    N, C_IN, C_OUT, L = 2, 4, 8, 16
    key = jax.random.PRNGKey(0)
    key, kx = jax.random.split(key)
    x = jax.random.normal(kx, (N, C_IN, L), jnp.float32)

    params = make_params(key, C_IN, C_OUT)
    w_fused, b_fused = fold_params(params, C_IN, C_OUT)
    ref = jax.block_until_ready(reference_forward(x, params))

    # f32 path (v5e-preferred): tight check against the lax.conv reference.
    out = jax.block_until_ready(multi_scale_forward(x, w_fused, b_fused))
    assert out.shape == (N, 4 * C_OUT, L + 1), out.shape
    assert jnp.allclose(out, ref, rtol=1e-4, atol=1e-4), (
        float(jnp.max(jnp.abs(out - ref))))

    # bf16 matmul + bf16 output path (v6e/v7x): loose check (inputs/outputs quantized).
    out_bf16 = jax.block_until_ready(
        multi_scale_forward(x, w_fused, b_fused,
                            matmul_dtype=jnp.bfloat16, out_dtype=jnp.bfloat16))
    assert out_bf16.shape == (N, 4 * C_OUT, L + 1), out_bf16.shape
    assert out_bf16.dtype == jnp.bfloat16
    assert jnp.allclose(out_bf16.astype(jnp.float32), ref, rtol=2e-1, atol=2e-1), (
        float(jnp.max(jnp.abs(out_bf16.astype(jnp.float32) - ref))))

    print("KERNEL_OK")
</pallas_src>

<mosaic_0001>
module attributes {stable_mosaic.version = 11 : i64} {
  func.func @_msconv_kernel(%arg0: i32, %arg1: memref<2x4x16xf32, #tpu.memory_space<vmem>>, %arg2: memref<32x192xf32, #tpu.memory_space<vmem>>, %arg3: memref<32x1xf32, #tpu.memory_space<vmem>>, %arg4: memref<2x32x128xf32, #tpu.memory_space<vmem>>, %arg5: memref<8x304xf32, #tpu.memory_space<vmem>>, %arg6: memref<192x256xf32, #tpu.memory_space<vmem>>) attributes {dimension_semantics = [#tpu.dimension_semantics<parallel>], iteration_bounds = array<i64: 1>, scalar_prefetch = 0 : i64, scratch_operands = 2 : i64, tpu.core_type = #tpu.core_type<tc>, window_params = [{transform_indices = @transform_0, window_bounds = array<i64: 2, 4, 16>}, {pipeline_mode = #tpu.pipeline_mode<synchronous>, transform_indices = @transform_1, window_bounds = array<i64: 32, 192>}, {pipeline_mode = #tpu.pipeline_mode<synchronous>, transform_indices = @transform_2, window_bounds = array<i64: 32, 1>}, {transform_indices = @transform_3, window_bounds = array<i64: 2, 32, 128>}]} {
    %cst = arith.constant 0.000000e+00 : f32
    %0 = vector.broadcast %cst : f32 to vector<4x24xf32>
    %c0 = arith.constant 0 : index
    %c0_0 = arith.constant 0 : index
    %1 = vector.load %arg5[%c0, %c0_0] : memref<8x304xf32, #tpu.memory_space<vmem>>, vector<4x24xf32>
    tpu.vector_store %arg5[%c0, %c0_0], %0 {strides = array<i32>} : memref<8x304xf32, #tpu.memory_space<vmem>>, vector<4x24xf32>,
    %c0_1 = arith.constant 0 : index
    %c0_2 = arith.constant 0 : index
    %c0_3 = arith.constant 0 : index
    %2 = vector.load %arg1[%c0_1, %c0_2, %c0_3] : memref<2x4x16xf32, #tpu.memory_space<vmem>>, vector<1x4x16xf32>
    %3 = vector.shape_cast %2 : vector<1x4x16xf32> to vector<4x16xf32>
    %c0_4 = arith.constant 0 : index
    %c24 = arith.constant 24 : index
    %4 = vector.load %arg5[%c0_4, %c24] : memref<8x304xf32, #tpu.memory_space<vmem>>, vector<4x16xf32>
    tpu.vector_store %arg5[%c0_4, %c24], %3 {strides = array<i32>} : memref<8x304xf32, #tpu.memory_space<vmem>>, vector<4x16xf32>,
    %cst_5 = arith.constant 0.000000e+00 : f32
    %5 = vector.broadcast %cst_5 : f32 to vector<4x112xf32>
    %c0_6 = arith.constant 0 : index
    %c40 = arith.constant 40 : index
    %6 = vector.load %arg5[%c0_6, %c40] : memref<8x304xf32, #tpu.memory_space<vmem>>, vector<4x112xf32>
    tpu.vector_store %arg5[%c0_6, %c40], %5 {strides = array<i32>} : memref<8x304xf32, #tpu.memory_space<vmem>>, vector<4x112xf32>,
    %c1 = arith.constant 1 : index
    %c0_7 = arith.constant 0 : index
    %c0_8 = arith.constant 0 : index
    %7 = vector.load %arg1[%c1, %c0_7, %c0_8] : memref<2x4x16xf32, #tpu.memory_space<vmem>>, vector<1x4x16xf32>
    %8 = vector.shape_cast %7 : vector<1x4x16xf32> to vector<4x16xf32>
    %c0_9 = arith.constant 0 : index
    %c152 = arith.constant 152 : index
    %9 = vector.load %arg5[%c0_9, %c152] : memref<8x304xf32, #tpu.memory_space<vmem>>, vector<4x16xf32>
    tpu.vector_store %arg5[%c0_9, %c152], %8 {strides = array<i32>} : memref<8x304xf32, #tpu.memory_space<vmem>>, vector<4x16xf32>,
    %cst_10 = arith.constant 0.000000e+00 : f32
    %10 = vector.broadcast %cst_10 : f32 to vector<4x136xf32>
    %c0_11 = arith.constant 0 : index
    %c168 = arith.constant 168 : index
    %11 = vector.load %arg5[%c0_11, %c168] : memref<8x304xf32, #tpu.memory_space<vmem>>, vector<4x136xf32>
    tpu.vector_store %arg5[%c0_11, %c168], %10 {strides = array<i32>} : memref<8x304xf32, #tpu.memory_space<vmem>>, vector<4x136xf32>,
    %cst_12 = arith.constant 0.000000e+00 : f32
    %12 = vector.broadcast %cst_12 : f32 to vector<4x23xf32>
    %c4 = arith.constant 4 : index
    %c0_13 = arith.constant 0 : index
    %13 = vector.load %arg5[%c4, %c0_13] : memref<8x304xf32, #tpu.memory_space<vmem>>, vector<4x23xf32>
    tpu.vector_store %arg5[%c4, %c0_13], %12 {strides = array<i32>} : memref<8x304xf32, #tpu.memory_space<vmem>>, vector<4x23xf32>,
    %c0_14 = arith.constant 0 : index
    %c0_15 = arith.constant 0 : index
    %c0_16 = arith.constant 0 : index
    %14 = vector.load %arg1[%c0_14, %c0_15, %c0_16] : memref<2x4x16xf32, #tpu.memory_space<vmem>>, vector<1x4x16xf32>
    %15 = vector.shape_cast %14 : vector<1x4x16xf32> to vector<4x16xf32>
    %c4_17 = arith.constant 4 : index
    %c23 = arith.constant 23 : index
    %16 = vector.load %arg5[%c4_17, %c23] : memref<8x304xf32, #tpu.memory_space<vmem>>, vector<4x16xf32>
    tpu.vector_store %arg5[%c4_17, %c23], %15 {strides = array<i32>} : memref<8x304xf32, #tpu.memory_space<vmem>>, vector<4x16xf32>,
    %cst_18 = arith.constant 0.000000e+00 : f32
    %17 = vector.broadcast %cst_18 : f32 to vector<4x112xf32>
    %c4_19 = arith.constant 4 : index
    %c39 = arith.constant 39 : index
    %18 = vector.load %arg5[%c4_19, %c39] : memref<8x304xf32, #tpu.memory_space<vmem>>, vector<4x112xf32>
    tpu.vector_store %arg5[%c4_19, %c39], %17 {strides = array<i32>} : memref<8x304xf32, #tpu.memory_space<vmem>>, vector<4x112xf32>,
    %c1_20 = arith.constant 1 : index
    %c0_21 = arith.constant 0 : index
    %c0_22 = arith.constant 0 : index
    %19 = vector.load %arg1[%c1_20, %c0_21, %c0_22] : memref<2x4x16xf32, #tpu.memory_space<vmem>>, vector<1x4x16xf32>
    %20 = vector.shape_cast %19 : vector<1x4x16xf32> to vector<4x16xf32>
    %c4_23 = arith.constant 4 : index
    %c151 = arith.constant 151 : index
    %21 = vector.load %arg5[%c4_23, %c151] : memref<8x304xf32, #tpu.memory_space<vmem>>, vector<4x16xf32>
    tpu.vector_store %arg5[%c4_23, %c151], %20 {strides = array<i32>} : memref<8x304xf32, #tpu.memory_space<vmem>>, vector<4x16xf32>,
    %cst_24 = arith.constant 0.000000e+00 : f32
    %22 = vector.broadcast %cst_24 : f32 to vector<4x137xf32>
    %c4_25 = arith.constant 4 : index
    %c167 = arith.constant 167 : index
    %23 = vector.load %arg5[%c4_25, %c167] : memref<8x304xf32, #tpu.memory_space<vmem>>, vector<4x137xf32>
    tpu.vector_store %arg5[%c4_25, %c167], %22 {strides = array<i32>} : memref<8x304xf32, #tpu.memory_space<vmem>>, vector<4x137xf32>,
    %c0_26 = arith.constant 0 : index
    %c0_27 = arith.constant 0 : index
    %24 = vector.load %arg5[%c0_26, %c0_27] : memref<8x304xf32, #tpu.memory_space<vmem>>, vector<8x256xf32>
    %c0_28 = arith.constant 0 : index
    %c0_29 = arith.constant 0 : index
    %25 = vector.load %arg6[%c0_28, %c0_29] : memref<192x256xf32, #tpu.memory_space<vmem>>, vector<8x256xf32>
    tpu.vector_store %arg6[%c0_28, %c0_29], %24 {strides = array<i32>} : memref<192x256xf32, #tpu.memory_space<vmem>>, vector<8x256xf32>,
    %c0_30 = arith.constant 0 : index
    %c2 = arith.constant 2 : index
    %26 = vector.load %arg5[%c0_30, %c2] : memref<8x304xf32, #tpu.memory_space<vmem>>, vector<8x256xf32>
    %c8 = arith.constant 8 : index
    %c0_31 = arith.constant 0 : index
    %27 = vector.load %arg6[%c8, %c0_31] : memref<192x256xf32, #tpu.memory_space<vmem>>, vector<8x256xf32>
    tpu.vector_store %arg6[%c8, %c0_31], %26 {strides = array<i32>} : memref<192x256xf32, #tpu.memory_space<vmem>>, vector<8x256xf32>,
    %c0_32 = arith.constant 0 : index
    %c4_33 = arith.constant 4 : index
    %28 = vector.load %arg5[%c0_32, %c4_33] : memref<8x304xf32, #tpu.memory_space<vmem>>, vector<8x256xf32>
    %c16 = arith.constant 16 : index
    %c0_34 = arith.constant 0 : index
    %29 = vector.load %arg6[%c16, %c0_34] : memref<192x256xf32, #tpu.memory_space<vmem>>, vector<8x256xf32>
    tpu.vector_store %arg6[%c16, %c0_34], %28 {strides = array<i32>} : memref<192x256xf32, #tpu.memory_space<vmem>>, vector<8x256xf32>,
    %c0_35 = arith.constant 0 : index
    %c6 = arith.constant 6 : index
    %30 = vector.load %arg5[%c0_35, %c6] : memref<8x304xf32, #tpu.memory_space<vmem>>, vector<8x256xf32>
    %c24_36 = arith.constant 24 : index
    %c0_37 = arith.constant 0 : index
    %31 = vector.load %arg6[%c24_36, %c0_37] : memref<192x256xf32, #tpu.memory_space<vmem>>, vector<8x256xf32>
    tpu.vector_store %arg6[%c24_36, %c0_37], %30 {strides = array<i32>} : memref<192x256xf32, #tpu.memory_space<vmem>>, vector<8x256xf32>,
    %c0_38 = arith.constant 0 : index
    %c8_39 = arith.constant 8 : index
    %32 = vector.load %arg5[%c0_38, %c8_39] : memref<8x304xf32, #tpu.memory_space<vmem>>, vector<8x256xf32>
    %c32 = arith.constant 32 : index
    %c0_40 = arith.constant 0 : index
    %33 = vector.load %arg6[%c32, %c0_40] : memref<192x256xf32, #tpu.memory_space<vmem>>, vector<8x256xf32>
    tpu.vector_store %arg6[%c32, %c0_40], %32 {strides = array<i32>} : memref<192x256xf32, #tpu.memory_space<vmem>>, vector<8x256xf32>,
    %c0_41 = arith.constant 0 : index
    %c10 = arith.constant 10 : index
    %34 = vector.load %arg5[%c0_41, %c10] : memref<8x304xf32, #tpu.memory_space<vmem>>, vector<8x256xf32>
    %c40_42 = arith.constant 40 : index
    %c0_43 = arith.constant 0 : index
    %35 = vector.load %arg6[%c40_42, %c0_43] : memref<192x256xf32, #tpu.memory_space<vmem>>, vector<8x256xf32>
    tpu.vector_store %arg6[%c40_42, %c0_43], %34 {strides = array<i32>} : memref<192x256xf32, #tpu.memory_space<vmem>>, vector<8x256xf32>,
    %c0_44 = arith.constant 0 : index
    %c12 = arith.constant 12 : index
    %36 = vector.load %arg5[%c0_44, %c12] : memref<8x304xf32, #tpu.memory_space<vmem>>, vector<8x256xf32>
    %c48 = arith.constant 48 : index
    %c0_45 = arith.constant 0 : index
    %37 = vector.load %arg6[%c48, %c0_45] : memref<192x256xf32, #tpu.memory_space<vmem>>, vector<8x256xf32>
    tpu.vector_store %arg6[%c48, %c0_45], %36 {strides = array<i32>} : memref<192x256xf32, #tpu.memory_space<vmem>>, vector<8x256xf32>,
    %c0_46 = arith.constant 0 : index
    %c14 = arith.constant 14 : index
    %38 = vector.load %arg5[%c0_46, %c14] : memref<8x304xf32, #tpu.memory_space<vmem>>, vector<8x256xf32>
    %c56 = arith.constant 56 : index
    %c0_47 = arith.constant 0 : index
    %39 = vector.load %arg6[%c56, %c0_47] : memref<192x256xf32, #tpu.memory_space<vmem>>, vector<8x256xf32>
    tpu.vector_store %arg6[%c56, %c0_47], %38 {strides = array<i32>} : memref<192x256xf32, #tpu.memory_space<vmem>>, vector<8x256xf32>,
    %c0_48 = arith.constant 0 : index
    %c16_49 = arith.constant 16 : index
    %40 = vector.load %arg5[%c0_48, %c16_49] : memref<8x304xf32, #tpu.memory_space<vmem>>, vector<8x256xf32>
    %c64 = arith.constant 64 : index
    %c0_50 = arith.constant 0 : index
    %41 = vector.load %arg6[%c64, %c0_50] : memref<192x256xf32, #tpu.memory_space<vmem>>, vector<8x256xf32>
    tpu.vector_store %arg6[%c64, %c0_50], %40 {strides = array<i32>} : memref<192x256xf32, #tpu.memory_space<vmem>>, vector<8x256xf32>,
    %c0_51 = arith.constant 0 : index
    %c18 = arith.constant 18 : index
    %42 = vector.load %arg5[%c0_51, %c18] : memref<8x304xf32, #tpu.memory_space<vmem>>, vector<8x256xf32>
    %c72 = arith.constant 72 : index
    %c0_52 = arith.constant 0 : index
    %43 = vector.load %arg6[%c72, %c0_52] : memref<192x256xf32, #tpu.memory_space<vmem>>, vector<8x256xf32>
    tpu.vector_store %arg6[%c72, %c0_52], %42 {strides = array<i32>} : memref<192x256xf32, #tpu.memory_space<vmem>>, vector<8x256xf32>,
    %c0_53 = arith.constant 0 : index
    %c20 = arith.constant 20 : index
    %44 = vector.load %arg5[%c0_53, %c20] : memref<8x304xf32, #tpu.memory_space<vmem>>, vector<8x256xf32>
    %c80 = arith.constant 80 : index
    %c0_54 = arith.constant 0 : index
    %45 = vector.load %arg6[%c80, %c0_54] : memref<192x256xf32, #tpu.memory_space<vmem>>, vector<8x256xf32>
    tpu.vector_store %arg6[%c80, %c0_54], %44 {strides = array<i32>} : memref<192x256xf32, #tpu.memory_space<vmem>>, vector<8x256xf32>,
    %c0_55 = arith.constant 0 : index
    %c22 = arith.constant 22 : index
    %46 = vector.load %arg5[%c0_55, %c22] : memref<8x304xf32, #tpu.memory_space<vmem>>, vector<8x256xf32>
    %c88 = arith.constant 88 : index
    %c0_56 = arith.constant 0 : index
    %47 = vector.load %arg6[%c88, %c0_56] : memref<192x256xf32, #tpu.memory_space<vmem>>, vector<8x256xf32>
    tpu.vector_store %arg6[%c88, %c0_56], %46 {strides = array<i32>} : memref<192x256xf32, #tpu.memory_space<vmem>>, vector<8x256xf32>,
    %c0_57 = arith.constant 0 : index
    %c24_58 = arith.constant 24 : index
    %48 = vector.load %arg5[%c0_57, %c24_58] : memref<8x304xf32, #tpu.memory_space<vmem>>, vector<8x256xf32>
    %c96 = arith.constant 96 : index
    %c0_59 = arith.constant 0 : index
    %49 = vector.load %arg6[%c96, %c0_59] : memref<192x256xf32, #tpu.memory_space<vmem>>, vector<8x256xf32>
    tpu.vector_store %arg6[%c96, %c0_59], %48 {strides = array<i32>} : memref<192x256xf32, #tpu.memory_space<vmem>>, vector<8x256xf32>,
    %c0_60 = arith.constant 0 : index
    %c26 = arith.constant 26 : index
    %50 = vector.load %arg5[%c0_60, %c26] : memref<8x304xf32, #tpu.memory_space<vmem>>, vector<8x256xf32>
    %c104 = arith.constant 104 : index
    %c0_61 = arith.constant 0 : index
    %51 = vector.load %arg6[%c104, %c0_61] : memref<192x256xf32, #tpu.memory_space<vmem>>, vector<8x256xf32>
    tpu.vector_store %arg6[%c104, %c0_61], %50 {strides = array<i32>} : memref<192x256xf32, #tpu.memory_space<vmem>>, vector<8x256xf32>,
    %c0_62 = arith.constant 0 : index
    %c28 = arith.constant 28 : index
    %52 = vector.load %arg5[%c0_62, %c28] : memref<8x304xf32, #tpu.memory_space<vmem>>, vector<8x256xf32>
    %c112 = arith.constant 112 : index
    %c0_63 = arith.constant 0 : index
    %53 = vector.load %arg6[%c112, %c0_63] : memref<192x256xf32, #tpu.memory_space<vmem>>, vector<8x256xf32>
    tpu.vector_store %arg6[%c112, %c0_63], %52 {strides = array<i32>} : memref<192x256xf32, #tpu.memory_space<vmem>>, vector<8x256xf32>,
    %c0_64 = arith.constant 0 : index
    %c30 = arith.constant 30 : index
    %54 = vector.load %arg5[%c0_64, %c30] : memref<8x304xf32, #tpu.memory_space<vmem>>, vector<8x256xf32>
    %c120 = arith.constant 120 : index
    %c0_65 = arith.constant 0 : index
    %55 = vector.load %arg6[%c120, %c0_65] : memref<192x256xf32, #tpu.memory_space<vmem>>, vector<8x256xf32>
    tpu.vector_store %arg6[%c120, %c0_65], %54 {strides = array<i32>} : memref<192x256xf32, #tpu.memory_space<vmem>>, vector<8x256xf32>,
    %c0_66 = arith.constant 0 : index
    %c32_67 = arith.constant 32 : index
    %56 = vector.load %arg5[%c0_66, %c32_67] : memref<8x304xf32, #tpu.memory_space<vmem>>, vector<8x256xf32>
    %c128 = arith.constant 128 : index
    %c0_68 = arith.constant 0 : index
    %57 = vector.load %arg6[%c128, %c0_68] : memref<192x256xf32, #tpu.memory_space<vmem>>, vector<8x256xf32>
    tpu.vector_store %arg6[%c128, %c0_68], %56 {strides = array<i32>} : memref<192x256xf32, #tpu.memory_space<vmem>>, vector<8x256xf32>,
    %c0_69 = arith.constant 0 : index
    %c34 = arith.constant 34 : index
    %58 = vector.load %arg5[%c0_69, %c34] : memref<8x304xf32, #tpu.memory_space<vmem>>, vector<8x256xf32>
    %c136 = arith.constant 136 : index
    %c0_70 = arith.constant 0 : index
    %59 = vector.load %arg6[%c136, %c0_70] : memref<192x256xf32, #tpu.memory_space<vmem>>, vector<8x256xf32>
    tpu.vector_store %arg6[%c136, %c0_70], %58 {strides = array<i32>} : memref<192x256xf32, #tpu.memory_space<vmem>>, vector<8x256xf32>,
    %c0_71 = arith.constant 0 : index
    %c36 = arith.constant 36 : index
    %60 = vector.load %arg5[%c0_71, %c36] : memref<8x304xf32, #tpu.memory_space<vmem>>, vector<8x256xf32>
    %c144 = arith.constant 144 : index
    %c0_72 = arith.constant 0 : index
    %61 = vector.load %arg6[%c144, %c0_72] : memref<192x256xf32, #tpu.memory_space<vmem>>, vector<8x256xf32>
    tpu.vector_store %arg6[%c144, %c0_72], %60 {strides = array<i32>} : memref<192x256xf32, #tpu.memory_space<vmem>>, vector<8x256xf32>,
    %c0_73 = arith.constant 0 : index
    %c38 = arith.constant 38 : index
    %62 = vector.load %arg5[%c0_73, %c38] : memref<8x304xf32, #tpu.memory_space<vmem>>, vector<8x256xf32>
    %c152_74 = arith.constant 152 : index
    %c0_75 = arith.constant 0 : index
    %63 = vector.load %arg6[%c152_74, %c0_75] : memref<192x256xf32, #tpu.memory_space<vmem>>, vector<8x256xf32>
    tpu.vector_store %arg6[%c152_74, %c0_75], %62 {strides = array<i32>} : memref<192x256xf32, #tpu.memory_space<vmem>>, vector<8x256xf32>,
    %c0_76 = arith.constant 0 : index
    %c40_77 = arith.constant 40 : index
    %64 = vector.load %arg5[%c0_76, %c40_77] : memref<8x304xf32, #tpu.memory_space<vmem>>, vector<8x256xf32>
    %c160 = arith.constant 160 : index
    %c0_78 = arith.constant 0 : index
    %65 = vector.load %arg6[%c160, %c0_78] : memref<192x256xf32, #tpu.memory_space<vmem>>, vector<8x256xf32>
    tpu.vector_store %arg6[%c160, %c0_78], %64 {strides = array<i32>} : memref<192x256xf32, #tpu.memory_space<vmem>>, vector<8x256xf32>,
    %c0_79 = arith.constant 0 : index
    %c42 = arith.constant 42 : index
    %66 = vector.load %arg5[%c0_79, %c42] : memref<8x304xf32, #tpu.memory_space<vmem>>, vector<8x256xf32>
    %c168_80 = arith.constant 168 : index
    %c0_81 = arith.constant 0 : index
    %67 = vector.load %arg6[%c168_80, %c0_81] : memref<192x256xf32, #tpu.memory_space<vmem>>, vector<8x256xf32>
    tpu.vector_store %arg6[%c168_80, %c0_81], %66 {strides = array<i32>} : memref<192x256xf32, #tpu.memory_space<vmem>>, vector<8x256xf32>,
    %c0_82 = arith.constant 0 : index
    %c44 = arith.constant 44 : index
    %68 = vector.load %arg5[%c0_82, %c44] : memref<8x304xf32, #tpu.memory_space<vmem>>, vector<8x256xf32>
    %c176 = arith.constant 176 : index
    %c0_83 = arith.constant 0 : index
    %69 = vector.load %arg6[%c176, %c0_83] : memref<192x256xf32, #tpu.memory_space<vmem>>, vector<8x256xf32>
    tpu.vector_store %arg6[%c176, %c0_83], %68 {strides = array<i32>} : memref<192x256xf32, #tpu.memory_space<vmem>>, vector<8x256xf32>,
    %c0_84 = arith.constant 0 : index
    %c46 = arith.constant 46 : index
    %70 = vector.load %arg5[%c0_84, %c46] : memref<8x304xf32, #tpu.memory_space<vmem>>, vector<8x256xf32>
    %c184 = arith.constant 184 : index
    %c0_85 = arith.constant 0 : index
    %71 = vector.load %arg6[%c184, %c0_85] : memref<192x256xf32, #tpu.memory_space<vmem>>, vector<8x256xf32>
    tpu.vector_store %arg6[%c184, %c0_85], %70 {strides = array<i32>} : memref<192x256xf32, #tpu.memory_space<vmem>>, vector<8x256xf32>,
    %c0_86 = arith.constant 0 : index
    %c0_87 = arith.constant 0 : index
    %72 = vector.load %arg2[%c0_86, %c0_87] : memref<32x192xf32, #tpu.memory_space<vmem>>, vector<32x192xf32>
    %c0_88 = arith.constant 0 : index
    %c0_89 = arith.constant 0 : index
    %73 = vector.load %arg6[%c0_88, %c0_89] : memref<192x256xf32, #tpu.memory_space<vmem>>, vector<192x256xf32>
    %cst_90 = arith.constant dense<0.000000e+00> : vector<32x256xf32>
    %74 = tpu.matmul %72, %73, %cst_90 {dimension_numbers = #tpu.dot_dimension_numbers<[1], [0], [0], [1], [0, 0, 1, 1], [], []>} : vector<32x192xf32>, vector<192x256xf32>, vector<32x256xf32> -> vector<32x256xf32>
    %c0_91 = arith.constant 0 : index
    %c0_92 = arith.constant 0 : index
    %75 = vector.load %arg3[%c0_91, %c0_92] : memref<32x1xf32, #tpu.memory_space<vmem>>, vector<32x1xf32>
    %76 = vector.broadcast %75 : vector<32x1xf32> to vector<32x256xf32>
    %77 = arith.addf %74, %76 : vector<32x256xf32>
    %cst_93 = arith.constant 0.000000e+00 : f32
    %78 = vector.broadcast %cst_93 : f32 to vector<32x256xf32>
    %79 = arith.maximumf %77, %78 : vector<32x256xf32>
    %80 = vector.extract_strided_slice %79 {offsets = [0, 0], sizes = [32, 128], strides = [1, 1]} : vector<32x256xf32> to vector<32x128xf32>
    %c0_94 = arith.constant 0 : index
    %c0_95 = arith.constant 0 : index
    %c0_96 = arith.constant 0 : index
    %81 = vector.load %arg4[%c0_94, %c0_95, %c0_96] : memref<2x32x128xf32, #tpu.memory_space<vmem>>, vector<1x32x128xf32>
    %82 = vector.shape_cast %81 : vector<1x32x128xf32> to vector<32x128xf32>
    %83 = vector.shape_cast %80 : vector<32x128xf32> to vector<1x32x128xf32>
    tpu.vector_store %arg4[%c0_94, %c0_95, %c0_96], %83 {strides = array<i32>} : memref<2x32x128xf32, #tpu.memory_space<vmem>>, vector<1x32x128xf32>,
    %84 = vector.extract_strided_slice %79 {offsets = [0, 128], sizes = [32, 128], strides = [1, 1]} : vector<32x256xf32> to vector<32x128xf32>
    %c1_97 = arith.constant 1 : index
    %c0_98 = arith.constant 0 : index
    %c0_99 = arith.constant 0 : index
    %85 = vector.load %arg4[%c1_97, %c0_98, %c0_99] : memref<2x32x128xf32, #tpu.memory_space<vmem>>, vector<1x32x128xf32>
    %86 = vector.shape_cast %85 : vector<1x32x128xf32> to vector<32x128xf32>
    %87 = vector.shape_cast %84 : vector<32x128xf32> to vector<1x32x128xf32>
    tpu.vector_store %arg4[%c1_97, %c0_98, %c0_99], %87 {strides = array<i32>} : memref<2x32x128xf32, #tpu.memory_space<vmem>>, vector<1x32x128xf32>,
    return
  }
  func.func @transform_0(%arg0: i32) -> (i32, i32, i32) {
    %c0_i32 = arith.constant 0 : i32
    %c0_i32_0 = arith.constant 0 : i32
    %c0_i32_1 = arith.constant 0 : i32
    return %arg0, %c0_i32, %c0_i32_0 : i32, i32, i32
  }
  func.func @transform_1(%arg0: i32) -> (i32, i32) {
    %c0_i32 = arith.constant 0 : i32
    %c0_i32_0 = arith.constant 0 : i32
    %c0_i32_1 = arith.constant 0 : i32
    return %c0_i32, %c0_i32_0 : i32, i32
  }
  func.func @transform_2(%arg0: i32) -> (i32, i32) {
    %c0_i32 = arith.constant 0 : i32
    %c0_i32_0 = arith.constant 0 : i32
    %c0_i32_1 = arith.constant 0 : i32
    return %c0_i32, %c0_i32_0 : i32, i32
  }
  func.func @transform_3(%arg0: i32) -> (i32, i32, i32) {
    %c0_i32 = arith.constant 0 : i32
    %c0_i32_0 = arith.constant 0 : i32
    %c0_i32_1 = arith.constant 0 : i32
    return %arg0, %c0_i32, %c0_i32_0 : i32, i32, i32
  }
}

</mosaic_0001>

<llo_original>
// kernel: tpu_custom_call.1
$region0: #{tpu_custom_call.1}
  #allocation0 [shape = 'u32[]', space=smem, size = 0x4, offset = 0x4, fixed_abs, tag = 'smem constant byte address 0x4 - core index']
  #allocation1 [shape = 'u32[144,128]{1,0:T(1,128)}', space=vmem, size = 0x12000, scoped, tag = 'internal scratch']
  #allocation2 [shape = 'f32[8,304]{1,0:T(8,128)}', space=vmem, size = 0x3000, scoped, tag = 'scratch operand']
  #allocation3 [shape = 'f32[192,256]{1,0:T(8,128)}', space=vmem, size = 0x30000, scoped, tag = 'scratch operand']
  %s0 = inlined_call_operand.vmem [shape: f32[2,4,16], index: 0, kind: input, shape index: {}]
  %s1 = inlined_call_operand.hbm [shape: f32[32,192], index: 1, kind: input, shape index: {}]
  %s2 = inlined_call_operand.vmem [shape: f32[32,1], index: 2, kind: input, shape index: {}]
  %s3 = inlined_call_operand.hbm [shape: f32[2,32,128], index: 3, kind: output, shape index: {}]
  %s4 = sld [smem:[#allocation0]]
  $region26: #{tpu_custom_call.1} parent=0
    _
  %s6 = ssub.s32 1, %s4
  %s7 = scalar_select 0, %s6, %s4
  $region1: #{tpu_custom_call.1} parent=0
    #allocation4 [shape = 'u8[32768]{0}', space=vmem, size = 0x8000, scoped, tag = 'input window, operand 1, single buffered']
    #allocation5 [shape = 's32[1]{0}', space=sflag, size = 0x4, scoped, tag = 'scoped memory for tpu_custom_call.1']
    #allocation6 [shape = 's32[1]{0}', space=sflag, size = 0x4, scoped, tag = 'scoped memory for tpu_custom_call.1']
    #allocation7 [shape = 'u8[32768]{0}', space=vmem, size = 0x8000, scoped, tag = 'output window, operand 0, single buffered']
    %8 = vsyncpa [#allocation5], 0
    %9 = vsyncpa [#allocation6], 0
    // Predicated region
    $region2: #{tpu_custom_call.1} parent=1 // pred_check
      _
    $region3: #{tpu_custom_call.1} parent=1 // pred_check_branch
      %11 = sbr.rel (0) target = $region5
    $region4: #{tpu_custom_call.1} parent=1 // pred_region
      _
    $region5: #{tpu_custom_call.1} parent=1 // pred_fallthru
      _
    // Predicated region
    $region6: #{tpu_custom_call.1} parent=1 // pred_check
      _
    $region7: #{tpu_custom_call.1} parent=1 // pred_check_branch
      %13 = sbr.rel (0) target = $region9
    $region8: #{tpu_custom_call.1} parent=1 // pred_region
      %s15 = ssub.s32 1024, 1024
      %16 = vsyncadd [#allocation5], %s15
      %s17 = sshll.u32 [#allocation4], 4
      %s18 = int_to_ptr.vmem [resolvable:$true] %s17
      %23 = dma.hbm_to_vmem [thread:$0]  %s1, 1024, %s18, [#allocation5], 256, 256, 16
    $region9: #{tpu_custom_call.1} parent=1 // pred_fallthru
      _
    // Predicated region
    $region10: #{tpu_custom_call.1} parent=1 // pred_check
      _
    $region11: #{tpu_custom_call.1} parent=1 // pred_check_branch
      %25 = sbr.rel (0) target = $region13
    $region12: #{tpu_custom_call.1} parent=1 // pred_region
      _
    $region13: #{tpu_custom_call.1} parent=1 // pred_fallthru
      _
    // Predicated region
    $region14: #{tpu_custom_call.1} parent=1 // pred_check
      _
    $region15: #{tpu_custom_call.1} parent=1 // pred_check_branch
      %27 = sbr.rel (0) target = $region17
    $region16: #{tpu_custom_call.1} parent=1 // pred_region
      %28 = dma.done [#allocation5], 1024
    $region17: #{tpu_custom_call.1} parent=1 // pred_fallthru
      _
    %vm29 = vcmask 191488
    %30 = vst.msk [vmem:[#allocation2] sm:$0xf] %vm29, 0.0
    %v31 = vld [vmem:[%s0] sm:$0xf]
    %33 = vrot.lane.b32.xlu0 %v31, 24
    %v34 = vpop.permute.xlu0 %33
    %vm36 = vcmask 322752
    %37 = vst.msk [vmem:[#allocation2] sm:$0xf] %vm36, %v34
    %vm38 = vcmask 1043776
    %39 = vst.msk [vmem:[#allocation2] sm:$0xf] %vm38, 0.0
    %40 = vst.msk [vmem:[#allocation2 + $0x8] sm:$0xf] %vm29, 0.0
    %s41 = scalar_lea.vmem %s0, 4
    %v42 = vld [vmem:[%s41] sm:$0xf]
    %44 = vrot.lane.b32.xlu0 %v42, 24
    %v45 = vpop.permute.xlu0 %44
    %47 = vst.msk [vmem:[#allocation2 + $0x8] sm:$0xf] %vm36, %v45
    %48 = vst.msk [vmem:[#allocation2 + $0x8] sm:$0xf] %vm38, 0.0
    %vm49 = vcmask 388096
    %50 = vst.msk [vmem:[#allocation2 + $0x10] sm:$0xf] %vm49, 0.0
    %vm51 = vcmask 187396
    %52 = vst.msk [vmem:[#allocation2] sm:$0xf0] %vm51, 0.0
    %v53 = vld [vmem:[%s0] sm:$0xf]
    %v55 = vrot.slane %v53, 4
    %56 = vrot.lane.b32.xlu0 %v55, 23
    %v57 = vpop.permute.xlu0 %56
    %vm59 = vcmask 318652
    %60 = vst.msk [vmem:[#allocation2] sm:$0xf0] %vm59, %v57
    %vm61 = vcmask 1047868
    %62 = vst.msk [vmem:[#allocation2] sm:$0xf0] %vm61, 0.0
    %63 = vst.msk [vmem:[#allocation2 + $0x8] sm:$0xf0] %vm51, 0.0
    %v64 = vld [vmem:[%s41] sm:$0xf]
    %v66 = vrot.slane %v64, 4
    %67 = vrot.lane.b32.xlu0 %v66, 23
    %v68 = vpop.permute.xlu0 %67
    %70 = vst.msk [vmem:[#allocation2 + $0x8] sm:$0xf0] %vm59, %v68
    %71 = vst.msk [vmem:[#allocation2 + $0x8] sm:$0xf0] %vm61, 0.0
    %vm72 = vcmask 392196
    %73 = vst.msk [vmem:[#allocation2 + $0x10] sm:$0xf0] %vm72, 0.0
    %v74 = vld [vmem:[#allocation2] sm:$0xff]
    %v75 = vld [vmem:[#allocation2 + $0x8] sm:$0xff]
    %76 = vst [vmem:[#allocation3] sm:$0xff] %v74
    %77 = vst [vmem:[#allocation3 + $0x8] sm:$0xff] %v75
    %v78 = vld [vmem:[#allocation2] sm:$0xff]
    %v79 = vld [vmem:[#allocation2 + $0x8] sm:$0xff]
    %v80 = vld [vmem:[#allocation2 + $0x10] sm:$0xff]
    %84 = vrot.lane.b32.xlu0 %v78, 126
    %v85 = vpop.permute.xlu0 %84
    %86 = vrot.lane.b32.xlu0 %v79, 126
    %v87 = vpop.permute.xlu0 %86
    %88 = vrot.lane.b32.xlu0 %v80, 126
    %v89 = vpop.permute.xlu0 %88
    %vm90 = vcmask 1031168
    %v91 = vsel %vm90, %v85, %v87
    %v92 = vsel %vm90, %v87, %v89
    %95 = vst [vmem:[#allocation3 + $0x10] sm:$0xff] %v91
    %96 = vst [vmem:[#allocation3 + $0x18] sm:$0xff] %v92
    %v97 = vld [vmem:[#allocation2] sm:$0xff]
    %v98 = vld [vmem:[#allocation2 + $0x8] sm:$0xff]
    %v99 = vld [vmem:[#allocation2 + $0x10] sm:$0xff]
    %103 = vrot.lane.b32.xlu0 %v97, 124
    %v104 = vpop.permute.xlu0 %103
    %105 = vrot.lane.b32.xlu0 %v98, 124
    %v106 = vpop.permute.xlu0 %105
    %107 = vrot.lane.b32.xlu0 %v99, 124
    %v108 = vpop.permute.xlu0 %107
    %vm109 = vcmask 1014784
    %v110 = vsel %vm109, %v104, %v106
    %v111 = vsel %vm109, %v106, %v108
    %114 = vst [vmem:[#allocation3 + $0x20] sm:$0xff] %v110
    %115 = vst [vmem:[#allocation3 + $0x28] sm:$0xff] %v111
    %v116 = vld [vmem:[#allocation2] sm:$0xff]
    %v117 = vld [vmem:[#allocation2 + $0x8] sm:$0xff]
    %v118 = vld [vmem:[#allocation2 + $0x10] sm:$0xff]
    %122 = vrot.lane.b32.xlu0 %v116, 122
    %v123 = vpop.permute.xlu0 %122
    %124 = vrot.lane.b32.xlu0 %v117, 122
    %v125 = vpop.permute.xlu0 %124
    %126 = vrot.lane.b32.xlu0 %v118, 122
    %v127 = vpop.permute.xlu0 %126
    %vm128 = vcmask 998400
    %v129 = vsel %vm128, %v123, %v125
    %v130 = vsel %vm128, %v125, %v127
    %133 = vst [vmem:[#allocation3 + $0x30] sm:$0xff] %v129
    %134 = vst [vmem:[#allocation3 + $0x38] sm:$0xff] %v130
    %v135 = vld [vmem:[#allocation2] sm:$0xff]
    %v136 = vld [vmem:[#allocation2 + $0x8] sm:$0xff]
    %v137 = vld [vmem:[#allocation2 + $0x10] sm:$0xff]
    %141 = vrot.lane.b32.xlu0 %v135, 120
    %v142 = vpop.permute.xlu0 %141
    %143 = vrot.lane.b32.xlu0 %v136, 120
    %v144 = vpop.permute.xlu0 %143
    %145 = vrot.lane.b32.xlu0 %v137, 120
    %v146 = vpop.permute.xlu0 %145
    %vm147 = vcmask 982016
    %v148 = vsel %vm147, %v142, %v144
    %v149 = vsel %vm147, %v144, %v146
    %152 = vst [vmem:[#allocation3 + $0x40] sm:$0xff] %v148
    %153 = vst [vmem:[#allocation3 + $0x48] sm:$0xff] %v149
    %v154 = vld [vmem:[#allocation2] sm:$0xff]
    %v155 = vld [vmem:[#allocation2 + $0x8] sm:$0xff]
    %v156 = vld [vmem:[#allocation2 + $0x10] sm:$0xff]
    %160 = vrot.lane.b32.xlu0 %v154, 118
    %v161 = vpop.permute.xlu0 %160
    %162 = vrot.lane.b32.xlu0 %v155, 118
    %v163 = vpop.permute.xlu0 %162
    %164 = vrot.lane.b32.xlu0 %v156, 118
    %v165 = vpop.permute.xlu0 %164
    %vm166 = vcmask 965632
    %v167 = vsel %vm166, %v161, %v163
    %v168 = vsel %vm166, %v163, %v165
    %171 = vst [vmem:[#allocation3 + $0x50] sm:$0xff] %v167
    %172 = vst [vmem:[#allocation3 + $0x58] sm:$0xff] %v168
    %v173 = vld [vmem:[#allocation2] sm:$0xff]
    %v174 = vld [vmem:[#allocation2 + $0x8] sm:$0xff]
    %v175 = vld [vmem:[#allocation2 + $0x10] sm:$0xff]
    %179 = vrot.lane.b32.xlu0 %v173, 116
    %v180 = vpop.permute.xlu0 %179
    %181 = vrot.lane.b32.xlu0 %v174, 116
    %v182 = vpop.permute.xlu0 %181
    %183 = vrot.lane.b32.xlu0 %v175, 116
    %v184 = vpop.permute.xlu0 %183
    %vm185 = vcmask 949248
    %v186 = vsel %vm185, %v180, %v182
    %v187 = vsel %vm185, %v182, %v184
    %190 = vst [vmem:[#allocation3 + $0x60] sm:$0xff] %v186
    %191 = vst [vmem:[#allocation3 + $0x68] sm:$0xff] %v187
    %v192 = vld [vmem:[#allocation2] sm:$0xff]
    %v193 = vld [vmem:[#allocation2 + $0x8] sm:$0xff]
    %v194 = vld [vmem:[#allocation2 + $0x10] sm:$0xff]
    %198 = vrot.lane.b32.xlu0 %v192, 114
    %v199 = vpop.permute.xlu0 %198
    %200 = vrot.lane.b32.xlu0 %v193, 114
    %v201 = vpop.permute.xlu0 %200
    %202 = vrot.lane.b32.xlu0 %v194, 114
    %v203 = vpop.permute.xlu0 %202
    %vm204 = vcmask 932864
    %v205 = vsel %vm204, %v199, %v201
    %v206 = vsel %vm204, %v201, %v203
    %209 = vst [vmem:[#allocation3 + $0x70] sm:$0xff] %v205
    %210 = vst [vmem:[#allocation3 + $0x78] sm:$0xff] %v206
    %v211 = vld [vmem:[#allocation2] sm:$0xff]
    %v212 = vld [vmem:[#allocation2 + $0x8] sm:$0xff]
    %v213 = vld [vmem:[#allocation2 + $0x10] sm:$0xff]
    %217 = vrot.lane.b32.xlu0 %v211, 112
    %v218 = vpop.permute.xlu0 %217
    %219 = vrot.lane.b32.xlu0 %v212, 112
    %v220 = vpop.permute.xlu0 %219
    %221 = vrot.lane.b32.xlu0 %v213, 112
    %v222 = vpop.permute.xlu0 %221
    %vm223 = vcmask 916480
    %v224 = vsel %vm223, %v218, %v220
    %v225 = vsel %vm223, %v220, %v222
    %228 = vst [vmem:[#allocation3 + $0x80] sm:$0xff] %v224
    %229 = vst [vmem:[#allocation3 + $0x88] sm:$0xff] %v225
    %v230 = vld [vmem:[#allocation2] sm:$0xff]
    %v231 = vld [vmem:[#allocation2 + $0x8] sm:$0xff]
    %v232 = vld [vmem:[#allocation2 + $0x10] sm:$0xff]
    %236 = vrot.lane.b32.xlu0 %v230, 110
    %v237 = vpop.permute.xlu0 %236
    %238 = vrot.lane.b32.xlu0 %v231, 110
    %v239 = vpop.permute.xlu0 %238
    %240 = vrot.lane.b32.xlu0 %v232, 110
    %v241 = vpop.permute.xlu0 %240
    %vm242 = vcmask 900096
    %v243 = vsel %vm242, %v237, %v239
    %v244 = vsel %vm242, %v239, %v241
    %247 = vst [vmem:[#allocation3 + $0x90] sm:$0xff] %v243
    %248 = vst [vmem:[#allocation3 + $0x98] sm:$0xff] %v244
    %v249 = vld [vmem:[#allocation2] sm:$0xff]
    %v250 = vld [vmem:[#allocation2 + $0x8] sm:$0xff]
    %v251 = vld [vmem:[#allocation2 + $0x10] sm:$0xff]
    %255 = vrot.lane.b32.xlu0 %v249, 108
    %v256 = vpop.permute.xlu0 %255
    %257 = vrot.lane.b32.xlu0 %v250, 108
    %v258 = vpop.permute.xlu0 %257
    %259 = vrot.lane.b32.xlu0 %v251, 108
    %v260 = vpop.permute.xlu0 %259
    %vm261 = vcmask 883712
    %v262 = vsel %vm261, %v256, %v258
    %v263 = vsel %vm261, %v258, %v260
    %266 = vst [vmem:[#allocation3 + $0xa0] sm:$0xff] %v262
    %267 = vst [vmem:[#allocation3 + $0xa8] sm:$0xff] %v263
    %v268 = vld [vmem:[#allocation2] sm:$0xff]
    %v269 = vld [vmem:[#allocation2 + $0x8] sm:$0xff]
    %v270 = vld [vmem:[#allocation2 + $0x10] sm:$0xff]
    %274 = vrot.lane.b32.xlu0 %v268, 106
    %v275 = vpop.permute.xlu0 %274
    %276 = vrot.lane.b32.xlu0 %v269, 106
    %v277 = vpop.permute.xlu0 %276
    %278 = vrot.lane.b32.xlu0 %v270, 106
    %v279 = vpop.permute.xlu0 %278
    %vm280 = vcmask 867328
    %v281 = vsel %vm280, %v275, %v277
    %v282 = vsel %vm280, %v277, %v279
    %285 = vst [vmem:[#allocation3 + $0xb0] sm:$0xff] %v281
    %286 = vst [vmem:[#allocation3 + $0xb8] sm:$0xff] %v282
    %v287 = vld [vmem:[#allocation2] sm:$0xff]
    %v288 = vld [vmem:[#allocation2 + $0x8] sm:$0xff]
    %v289 = vld [vmem:[#allocation2 + $0x10] sm:$0xff]
    %293 = vrot.lane.b32.xlu0 %v287, 104
    %v294 = vpop.permute.xlu0 %293
    %295 = vrot.lane.b32.xlu0 %v288, 104
    %v296 = vpop.permute.xlu0 %295
    %297 = vrot.lane.b32.xlu0 %v289, 104
    %v298 = vpop.permute.xlu0 %297
    %vm299 = vcmask 850944
    %v300 = vsel %vm299, %v294, %v296
    %v301 = vsel %vm299, %v296, %v298
    %304 = vst [vmem:[#allocation3 + $0xc0] sm:$0xff] %v300
    %305 = vst [vmem:[#allocation3 + $0xc8] sm:$0xff] %v301
    %v306 = vld [vmem:[#allocation2] sm:$0xff]
    %v307 = vld [vmem:[#allocation2 + $0x8] sm:$0xff]
    %v308 = vld [vmem:[#allocation2 + $0x10] sm:$0xff]
    %312 = vrot.lane.b32.xlu0 %v306, 102
    %v313 = vpop.permute.xlu0 %312
    %314 = vrot.lane.b32.xlu0 %v307, 102
    %v315 = vpop.permute.xlu0 %314
    %316 = vrot.lane.b32.xlu0 %v308, 102
    %v317 = vpop.permute.xlu0 %316
    %vm318 = vcmask 834560
    %v319 = vsel %vm318, %v313, %v315
    %v320 = vsel %vm318, %v315, %v317
    %323 = vst [vmem:[#allocation3 + $0xd0] sm:$0xff] %v319
    %324 = vst [vmem:[#allocation3 + $0xd8] sm:$0xff] %v320
    %v325 = vld [vmem:[#allocation2] sm:$0xff]
    %v326 = vld [vmem:[#allocation2 + $0x8] sm:$0xff]
    %v327 = vld [vmem:[#allocation2 + $0x10] sm:$0xff]
    %331 = vrot.lane.b32.xlu0 %v325, 100
    %v332 = vpop.permute.xlu0 %331
    %333 = vrot.lane.b32.xlu0 %v326, 100
    %v334 = vpop.permute.xlu0 %333
    %335 = vrot.lane.b32.xlu0 %v327, 100
    %v336 = vpop.permute.xlu0 %335
    %vm337 = vcmask 818176
    %v338 = vsel %vm337, %v332, %v334
    %v339 = vsel %vm337, %v334, %v336
    %342 = vst [vmem:[#allocation3 + $0xe0] sm:$0xff] %v338
    %343 = vst [vmem:[#allocation3 + $0xe8] sm:$0xff] %v339
    %v344 = vld [vmem:[#allocation2] sm:$0xff]
    %v345 = vld [vmem:[#allocation2 + $0x8] sm:$0xff]
    %v346 = vld [vmem:[#allocation2 + $0x10] sm:$0xff]
    %350 = vrot.lane.b32.xlu0 %v344, 98
    %v351 = vpop.permute.xlu0 %350
    %352 = vrot.lane.b32.xlu0 %v345, 98
    %v353 = vpop.permute.xlu0 %352
    %354 = vrot.lane.b32.xlu0 %v346, 98
    %v355 = vpop.permute.xlu0 %354
    %vm356 = vcmask 801792
    %v357 = vsel %vm356, %v351, %v353
    %v358 = vsel %vm356, %v353, %v355
    %361 = vst [vmem:[#allocation3 + $0xf0] sm:$0xff] %v357
    %362 = vst [vmem:[#allocation3 + $0xf8] sm:$0xff] %v358
    %v363 = vld [vmem:[#allocation2] sm:$0xff]
    %v364 = vld [vmem:[#allocation2 + $0x8] sm:$0xff]
    %v365 = vld [vmem:[#allocation2 + $0x10] sm:$0xff]
    %369 = vrot.lane.b32.xlu0 %v363, 96
    %v370 = vpop.permute.xlu0 %369
    %371 = vrot.lane.b32.xlu0 %v364, 96
    %v372 = vpop.permute.xlu0 %371
    %373 = vrot.lane.b32.xlu0 %v365, 96
    %v374 = vpop.permute.xlu0 %373
    %vm375 = vcmask 785408
    %v376 = vsel %vm375, %v370, %v372
    %v377 = vsel %vm375, %v372, %v374
    %380 = vst [vmem:[#allocation3 + $0x100] sm:$0xff] %v376
    %381 = vst [vmem:[#allocation3 + $0x108] sm:$0xff] %v377
    %v382 = vld [vmem:[#allocation2] sm:$0xff]
    %v383 = vld [vmem:[#allocation2 + $0x8] sm:$0xff]
    %v384 = vld [vmem:[#allocation2 + $0x10] sm:$0xff]
    %388 = vrot.lane.b32.xlu0 %v382, 94
    %v389 = vpop.permute.xlu0 %388
    %390 = vrot.lane.b32.xlu0 %v383, 94
    %v391 = vpop.permute.xlu0 %390
    %392 = vrot.lane.b32.xlu0 %v384, 94
    %v393 = vpop.permute.xlu0 %392
    %vm394 = vcmask 769024
    %v395 = vsel %vm394, %v389, %v391
    %v396 = vsel %vm394, %v391, %v393
    %399 = vst [vmem:[#allocation3 + $0x110] sm:$0xff] %v395
    %400 = vst [vmem:[#allocation3 + $0x118] sm:$0xff] %v396
    %v401 = vld [vmem:[#allocation2] sm:$0xff]
    %v402 = vld [vmem:[#allocation2 + $0x8] sm:$0xff]
    %v403 = vld [vmem:[#allocation2 + $0x10] sm:$0xff]
    %407 = vrot.lane.b32.xlu0 %v401, 92
    %v408 = vpop.permute.xlu0 %407
    %409 = vrot.lane.b32.xlu0 %v402, 92
    %v410 = vpop.permute.xlu0 %409
    %411 = vrot.lane.b32.xlu0 %v403, 92
    %v412 = vpop.permute.xlu0 %411
    %vm413 = vcmask 752640
    %v414 = vsel %vm413, %v408, %v410
    %v415 = vsel %vm413, %v410, %v412
    %418 = vst [vmem:[#allocation3 + $0x120] sm:$0xff] %v414
    %419 = vst [vmem:[#allocation3 + $0x128] sm:$0xff] %v415
    %v420 = vld [vmem:[#allocation2] sm:$0xff]
    %v421 = vld [vmem:[#allocation2 + $0x8] sm:$0xff]
    %v422 = vld [vmem:[#allocation2 + $0x10] sm:$0xff]
    %426 = vrot.lane.b32.xlu0 %v420, 90
    %v427 = vpop.permute.xlu0 %426
    %428 = vrot.lane.b32.xlu0 %v421, 90
    %v429 = vpop.permute.xlu0 %428
    %430 = vrot.lane.b32.xlu0 %v422, 90
    %v431 = vpop.permute.xlu0 %430
    %vm432 = vcmask 736256
    %v433 = vsel %vm432, %v427, %v429
    %v434 = vsel %vm432, %v429, %v431
    %437 = vst [vmem:[#allocation3 + $0x130] sm:$0xff] %v433
    %438 = vst [vmem:[#allocation3 + $0x138] sm:$0xff] %v434
    %v439 = vld [vmem:[#allocation2] sm:$0xff]
    %v440 = vld [vmem:[#allocation2 + $0x8] sm:$0xff]
    %v441 = vld [vmem:[#allocation2 + $0x10] sm:$0xff]
    %445 = vrot.lane.b32.xlu0 %v439, 88
    %v446 = vpop.permute.xlu0 %445
    %447 = vrot.lane.b32.xlu0 %v440, 88
    %v448 = vpop.permute.xlu0 %447
    %449 = vrot.lane.b32.xlu0 %v441, 88
    %v450 = vpop.permute.xlu0 %449
    %vm451 = vcmask 719872
    %v452 = vsel %vm451, %v446, %v448
    %v453 = vsel %vm451, %v448, %v450
    %456 = vst [vmem:[#allocation3 + $0x140] sm:$0xff] %v452
    %457 = vst [vmem:[#allocation3 + $0x148] sm:$0xff] %v453
    %v458 = vld [vmem:[#allocation2] sm:$0xff]
    %v459 = vld [vmem:[#allocation2 + $0x8] sm:$0xff]
    %v460 = vld [vmem:[#allocation2 + $0x10] sm:$0xff]
    %464 = vrot.lane.b32.xlu0 %v458, 86
    %v465 = vpop.permute.xlu0 %464
    %466 = vrot.lane.b32.xlu0 %v459, 86
    %v467 = vpop.permute.xlu0 %466
    %468 = vrot.lane.b32.xlu0 %v460, 86
    %v469 = vpop.permute.xlu0 %468
    %vm470 = vcmask 703488
    %v471 = vsel %vm470, %v465, %v467
    %v472 = vsel %vm470, %v467, %v469
    %475 = vst [vmem:[#allocation3 + $0x150] sm:$0xff] %v471
    %476 = vst [vmem:[#allocation3 + $0x158] sm:$0xff] %v472
    %v477 = vld [vmem:[#allocation2] sm:$0xff]
    %v478 = vld [vmem:[#allocation2 + $0x8] sm:$0xff]
    %v479 = vld [vmem:[#allocation2 + $0x10] sm:$0xff]
    %483 = vrot.lane.b32.xlu0 %v477, 84
    %v484 = vpop.permute.xlu0 %483
    %485 = vrot.lane.b32.xlu0 %v478, 84
    %v486 = vpop.permute.xlu0 %485
    %487 = vrot.lane.b32.xlu0 %v479, 84
    %v488 = vpop.permute.xlu0 %487
    %vm489 = vcmask 687104
    %v490 = vsel %vm489, %v484, %v486
    %v491 = vsel %vm489, %v486, %v488
    %494 = vst [vmem:[#allocation3 + $0x160] sm:$0xff] %v490
    %495 = vst [vmem:[#allocation3 + $0x168] sm:$0xff] %v491
    %v496 = vld [vmem:[#allocation2] sm:$0xff]
    %v497 = vld [vmem:[#allocation2 + $0x8] sm:$0xff]
    %v498 = vld [vmem:[#allocation2 + $0x10] sm:$0xff]
    %502 = vrot.lane.b32.xlu0 %v496, 82
    %v503 = vpop.permute.xlu0 %502
    %504 = vrot.lane.b32.xlu0 %v497, 82
    %v505 = vpop.permute.xlu0 %504
    %506 = vrot.lane.b32.xlu0 %v498, 82
    %v507 = vpop.permute.xlu0 %506
    %vm508 = vcmask 670720
    %v509 = vsel %vm508, %v503, %v505
    %v510 = vsel %vm508, %v505, %v507
    %513 = vst [vmem:[#allocation3 + $0x170] sm:$0xff] %v509
    %514 = vst [vmem:[#allocation3 + $0x178] sm:$0xff] %v510
    %v515 = vld [vmem:[#allocation4] sm:$0xff]
    %v516 = vld [vmem:[#allocation4 + $0x8] sm:$0xff]
    %v517 = vld [vmem:[#allocation4 + $0x10] sm:$0xff]
    %v518 = vld [vmem:[#allocation4 + $0x18] sm:$0xff]
    %v519 = vld [vmem:[#allocation4 + $0x20] sm:$0xff]
    %v520 = vld [vmem:[#allocation4 + $0x28] sm:$0xff]
    %v521 = vld [vmem:[#allocation4 + $0x30] sm:$0xff]
    %v522 = vld [vmem:[#allocation4 + $0x38] sm:$0xff]
    %v523 = vld [vmem:[#allocation3] sm:$0xff]
    %v524 = vld [vmem:[#allocation3 + $0x8] sm:$0xff]
    %v525 = vld [vmem:[#allocation3 + $0x10] sm:$0xff]
    %v526 = vld [vmem:[#allocation3 + $0x18] sm:$0xff]
    %v527 = vld [vmem:[#allocation3 + $0x20] sm:$0xff]
    %v528 = vld [vmem:[#allocation3 + $0x28] sm:$0xff]
    %v529 = vld [vmem:[#allocation3 + $0x30] sm:$0xff]
    %v530 = vld [vmem:[#allocation3 + $0x38] sm:$0xff]
    %v531 = vld [vmem:[#allocation3 + $0x40] sm:$0xff]
    %v532 = vld [vmem:[#allocation3 + $0x48] sm:$0xff]
    %v533 = vld [vmem:[#allocation3 + $0x50] sm:$0xff]
    %v534 = vld [vmem:[#allocation3 + $0x58] sm:$0xff]
    %v535 = vld [vmem:[#allocation3 + $0x60] sm:$0xff]
    %v536 = vld [vmem:[#allocation3 + $0x68] sm:$0xff]
    %v537 = vld [vmem:[#allocation3 + $0x70] sm:$0xff]
    %v538 = vld [vmem:[#allocation3 + $0x78] sm:$0xff]
    %v539 = vld [vmem:[#allocation3 + $0x80] sm:$0xff]
    %v540 = vld [vmem:[#allocation3 + $0x88] sm:$0xff]
    %v541 = vld [vmem:[#allocation3 + $0x90] sm:$0xff]
    %v542 = vld [vmem:[#allocation3 + $0x98] sm:$0xff]
    %v543 = vld [vmem:[#allocation3 + $0xa0] sm:$0xff]
    %v544 = vld [vmem:[#allocation3 + $0xa8] sm:$0xff]
    %v545 = vld [vmem:[#allocation3 + $0xb0] sm:$0xff]
    %v546 = vld [vmem:[#allocation3 + $0xb8] sm:$0xff]
    %v547 = vld [vmem:[#allocation3 + $0xc0] sm:$0xff]
    %v548 = vld [vmem:[#allocation3 + $0xc8] sm:$0xff]
    %v549 = vld [vmem:[#allocation3 + $0xd0] sm:$0xff]
    %v550 = vld [vmem:[#allocation3 + $0xd8] sm:$0xff]
    %v551 = vld [vmem:[#allocation3 + $0xe0] sm:$0xff]
    %v552 = vld [vmem:[#allocation3 + $0xe8] sm:$0xff]
    %v553 = vld [vmem:[#allocation3 + $0xf0] sm:$0xff]
    %v554 = vld [vmem:[#allocation3 + $0xf8] sm:$0xff]
    %v555 = vld [vmem:[#allocation3 + $0x100] sm:$0xff]
    %v556 = vld [vmem:[#allocation3 + $0x108] sm:$0xff]
    %v557 = vld [vmem:[#allocation3 + $0x110] sm:$0xff]
    %v558 = vld [vmem:[#allocation3 + $0x118] sm:$0xff]
    %v559 = vld [vmem:[#allocation3 + $0x120] sm:$0xff]
    %v560 = vld [vmem:[#allocation3 + $0x128] sm:$0xff]
    %v561 = vld [vmem:[#allocation3 + $0x130] sm:$0xff]
    %v562 = vld [vmem:[#allocation3 + $0x138] sm:$0xff]
    %v563 = vld [vmem:[#allocation3 + $0x140] sm:$0xff]
    %v564 = vld [vmem:[#allocation3 + $0x148] sm:$0xff]
    %v565 = vld [vmem:[#allocation3 + $0x150] sm:$0xff]
    %v566 = vld [vmem:[#allocation3 + $0x158] sm:$0xff]
    %v567 = vld [vmem:[#allocation3 + $0x160] sm:$0xff]
    %v568 = vld [vmem:[#allocation3 + $0x168] sm:$0xff]
    %v569 = vld [vmem:[#allocation3 + $0x170] sm:$0xff]
    %v570 = vld [vmem:[#allocation3 + $0x178] sm:$0xff]
    %v571 = vld [vmem:[%s2] sm:$0xff]
    %v572 = vld [vmem:[%s2 + $0x8] sm:$0xff]
    %v573 = vld [vmem:[%s2 + $0x10] sm:$0xff]
    %v574 = vld [vmem:[%s2 + $0x18] sm:$0xff]
    %576 = vset.pattern.permute.xlu0 0
    %577 = vperm.xlu0 %576, %v571
    %v578 = vpop.permute.xlu0 %577
    %581 = vset.pattern.permute.xlu0 0
    %582 = vperm.xlu0 %581, %v572
    %v583 = vpop.permute.xlu0 %582
    %586 = vset.pattern.permute.xlu0 0
    %587 = vperm.xlu0 %586, %v573
    %v588 = vpop.permute.xlu0 %587
    %591 = vset.pattern.permute.xlu0 0
    %592 = vperm.xlu0 %591, %v574
    %v593 = vpop.permute.xlu0 %592
    %vm595 = vcmask 523264
    %v597 = vsel %vm595, %v516, 0
    %v600 = vsel %vm595, %v518, 0
    %v603 = vsel %vm595, %v520, 0
    %v606 = vsel %vm595, %v522, 0
    %608 = vmatprep.subr.mxu0 %v524
    %609 = vmatpush1.msra.mxu0 %v523
    %610 = vmatprep.subr.mxu0 %v526
    %611 = vmatpush1.msra.mxu0 %v525
    %612 = vmatprep.subr.mxu0 %v528
    %613 = vmatpush1.msra.mxu0 %v527
    %614 = vmatprep.subr.mxu0 %v530
    %615 = vmatpush1.msra.mxu0 %v529
    %616 = vmatprep.subr.mxu0 %v532
    %617 = vmatpush1.msra.mxu0 %v531
    %618 = vmatprep.subr.mxu0 %v534
    %619 = vmatpush1.msra.mxu0 %v533
    %620 = vmatprep.subr.mxu0 %v536
    %621 = vmatpush1.msra.mxu0 %v535
    %622 = vmatprep.subr.mxu0 %v538
    %623 = vmatpush1.msra.mxu0 %v537
    %624 = vmatprep.subr.mxu0 %v540
    %625 = vmatpush1.msra.mxu0 %v539
    %626 = vmatprep.subr.mxu0 %v542
    %627 = vmatpush1.msra.mxu0 %v541
    %628 = vmatprep.subr.mxu0 %v544
    %629 = vmatpush1.msra.mxu0 %v543
    %630 = vmatprep.subr.mxu0 %v546
    %631 = vmatpush1.msra.mxu0 %v545
    %632 = vmatprep.subr.mxu0 %v548
    %633 = vmatpush1.msra.mxu0 %v547
    %634 = vmatprep.subr.mxu0 %v550
    %635 = vmatpush1.msra.mxu0 %v549
    %636 = vmatprep.subr.mxu0 %v552
    %637 = vmatpush1.msra.mxu0 %v551
    %638 = vmatprep.subr.mxu0 %v554
    %639 = vmatpush1.msra.mxu0 %v553
    %640 = vmatprep.subr.mxu0 %v556
    %641 = vmatpush1.msra.mxu0 %v555
    %642 = vmatprep.subr.mxu0 %v558
    %643 = vmatpush1.msra.mxu0 %v557
    %644 = vmatprep.subr.mxu0 %v560
    %645 = vmatpush1.msra.mxu0 %v559
    %646 = vmatprep.subr.mxu0 %v562
    %647 = vmatpush1.msra.mxu0 %v561
    %648 = vmatprep.subr.mxu0 %v564
    %649 = vmatpush1.msra.mxu0 %v563
    %650 = vmatprep.subr.mxu0 %v566
    %651 = vmatpush1.msra.mxu0 %v565
    %652 = vmatprep.subr.mxu0 %v568
    %653 = vmatpush1.msra.mxu0 %v567
    %654 = vmatprep.subr.mxu0 %v570
    %655 = vmatpush1.msra.mxu0 %v569
    %656 = vmatprep.subr.mxu0 0.0
    %657 = vmatpush1.msra.mxu0 0.0
    %658 = vmatprep.subr.mxu0 0.0
    %659 = vmatpush1.msra.mxu0 0.0
    %660 = vmatprep.subr.mxu0 0.0
    %661 = vmatpush1.msra.mxu0 0.0
    %662 = vmatprep.subr.mxu0 0.0
    %663 = vmatpush1.msra.mxu0 0.0
    %664 = vmatprep.subr.mxu0 0.0
    %665 = vmatpush1.msra.mxu0 0.0
    %666 = vmatprep.subr.mxu0 0.0
    %667 = vmatpush1.msra.mxu0 0.0
    %668 = vmatprep.subr.mxu0 0.0
    %669 = vmatpush1.msra.mxu0 0.0
    %670 = vmatprep.subr.mxu0 0.0
    %671 = vmatpush1.msra.mxu0 0.0
    %672 = vmatprep.mubr.f32.mxu0 %v597
    %673 = vmatmul.mubr.f32.gmra.mrb[0].mxu0 %v515
    %v674 = vpop.f32.mrb[0].mxu0
    %v675 = vadd.f32 %v578, %v674
    %v676 = vpop.f32.mrb[0].mxu0
    %v677 = vadd.f32 %v578, %v676
    %678 = vmatprep.mubr.f32.mxu0 %v600
    %679 = vmatmul.mubr.f32.gmra.mrb[0].mxu0 %v517
    %v680 = vpop.f32.mrb[0].mxu0
    %v681 = vadd.f32 %v583, %v680
    %v682 = vpop.f32.mrb[0].mxu0
    %v683 = vadd.f32 %v583, %v682
    %684 = vmatprep.mubr.f32.mxu0 %v603
    %685 = vmatmul.mubr.f32.gmra.mrb[0].mxu0 %v519
    %v686 = vpop.f32.mrb[0].mxu0
    %v687 = vadd.f32 %v588, %v686
    %v688 = vpop.f32.mrb[0].mxu0
    %v689 = vadd.f32 %v588, %v688
    %690 = vmatprep.mubr.f32.mxu0 %v606
    %691 = vmatmul.mubr.f32.gmra.mrb[0].mxu0 %v521
    %v692 = vpop.f32.mrb[0].mxu0
    %v693 = vadd.f32 %v593, %v692
    %v694 = vpop.f32.mrb[0].mxu0
    %v695 = vadd.f32 %v593, %v694
    %696 = vdwg.mxu0
    %v697 = vmax.f32 %v675, 0.0
    %v698 = vmax.f32 %v677, 0.0
    %v699 = vmax.f32 %v681, 0.0
    %v700 = vmax.f32 %v683, 0.0
    %v701 = vmax.f32 %v687, 0.0
    %v702 = vmax.f32 %v689, 0.0
    %v703 = vmax.f32 %v693, 0.0
    %v704 = vmax.f32 %v695, 0.0
    %705 = vst [vmem:[#allocation7] sm:$0xff] %v697
    %706 = vst [vmem:[#allocation7 + $0x8] sm:$0xff] %v699
    %707 = vst [vmem:[#allocation7 + $0x10] sm:$0xff] %v701
    %708 = vst [vmem:[#allocation7 + $0x18] sm:$0xff] %v703
    %s709 = scalar_lea.vmem [#allocation7], 32
    %710 = vst [vmem:[%s709] sm:$0xff] %v698
    %711 = vst [vmem:[%s709 + $0x8] sm:$0xff] %v700
    %712 = vst [vmem:[%s709 + $0x10] sm:$0xff] %v702
    %713 = vst [vmem:[%s709 + $0x18] sm:$0xff] %v704
    // Predicated region
    $region18: #{tpu_custom_call.1} parent=1 // pred_check
      _
    $region19: #{tpu_custom_call.1} parent=1 // pred_check_branch
      %715 = sbr.rel (0) target = $region21
    $region20: #{tpu_custom_call.1} parent=1 // pred_region
      %s717 = ssub.s32 1024, 1024
      %718 = vsyncadd [#allocation6], %s717
      %s719 = sshll.u32 [#allocation7], 4
      %s720 = int_to_ptr.vmem [resolvable:$true] %s719
      %725 = dma.vmem_to_hbm [thread:$0]  %s720, 1024, %s3, [#allocation6], 128, 128, 8
    $region21: #{tpu_custom_call.1} parent=1 // pred_fallthru
      _
    // Predicated region
    $region22: #{tpu_custom_call.1} parent=1 // pred_check
      _
    $region23: #{tpu_custom_call.1} parent=1 // pred_check_branch
      %727 = sbr.rel (0) target = $region25
    $region24: #{tpu_custom_call.1} parent=1 // pred_region
      %728 = dma.done [#allocation6], 1024
    $region25: #{tpu_custom_call.1} parent=1 // pred_fallthru
      _
    %729 = vsyncpa [#allocation5], 1
    %730 = vsyncpa [#allocation6], 1

</llo_original>
